<compile_context>
chip_gen: v7x
topology: tpu7x:2x2x1
jax: 0.10.0
libtpu: 0.0.40
codegen_flags: <defaults>
</compile_context>

<pallas_src>
import jax
import jax.numpy as jnp
from jax.experimental import pallas as pl
from jax.experimental.pallas import tpu as pltpu


def _kernel_dense_bayesian_kernel(xa_ref, cols_ref, rows_t_ref, o_ref):
    cols = cols_ref[...]        # (IN, D)       — IN on sublanes, tiny D on lanes
    rows_t = rows_t_ref[...]    # (D, OUT_pad)  — OUT_pad lane-dense (multiple of 128)
    D = cols.shape[1]

    # Squared norms and the <cols, rows> outer product, all on the VPU:
    #   c2[i]    = sum_d cols[i,d]^2                     -> (IN, 1)  column
    #   r2[j]    = sum_d rows[j,d]^2                     -> (1, OUT) row
    #   xy[i,j]  = sum_d cols[i,d] * rows[j,d]           -> (IN, OUT) via rank-1 outers
    # D is tiny (default 2), so an unrolled static Python loop is just a few bundles.
    c2 = cols[:, 0:1] * cols[:, 0:1]
    r2 = rows_t[0:1, :] * rows_t[0:1, :]
    xy = cols[:, 0:1] * rows_t[0:1, :]
    for d in range(1, D):
        c2 = c2 + cols[:, d:d + 1] * cols[:, d:d + 1]
        r2 = r2 + rows_t[d:d + 1, :] * rows_t[d:d + 1, :]
        xy = xy + cols[:, d:d + 1] * rows_t[d:d + 1, :]

    # w[i, j] = exp(-(||cols[i]||^2 + ||rows[j]||^2 - 2 * cols[i]·rows[j]))   (EUP exp)
    w = jnp.exp(-(c2 + r2 - 2.0 * xy))                  # (IN, OUT_pad)

    # y = (x * alpha) @ w on the MXU; lane-dense unmasked store of the output slab.
    o_ref[...] = jnp.dot(xa_ref[...], w, preferred_element_type=jnp.float32)

    # TODO(synk): reference PyTorch forward calls y.add(bias) out-of-place (result
    # discarded), so bias deliberately does not affect the output here either.


def kernel_dense_bayesian_forward(x, alpha, columns_mean, rows_mean):
    """x: (B, IN) f32; alpha: (IN,) f32; columns_mean: (IN, D); rows_mean: (OUT, D)."""
    B, IN = x.shape
    OUT, D = rows_mean.shape
    OUT_P = ((OUT + 127) // 128) * 128  # lane-dense output width

    # Fold alpha into x outside the kernel (cheap XLA fusion; drops one tiny DMA).
    xa = (x * alpha[None, :]).astype(jnp.float32)

    # rows presented as (D, OUT_P): OUT on the lane axis, zero-padded; the padded
    # columns of w produce garbage that is sliced away below.
    rows_t = jnp.zeros((D, OUT_P), jnp.float32).at[:, :OUT].set(rows_mean.T)

    y_padded = pl.pallas_call(
        _kernel_dense_bayesian_kernel,
        out_shape=jax.ShapeDtypeStruct((B, OUT_P), jnp.float32),
        in_specs=[
            pl.BlockSpec((B, IN), lambda: (0, 0)),
            pl.BlockSpec((IN, D), lambda: (0, 0)),
            pl.BlockSpec((D, OUT_P), lambda: (0, 0)),
        ],
        out_specs=pl.BlockSpec((B, OUT_P), lambda: (0, 0)),
        compiler_params=pltpu.CompilerParams(vmem_limit_bytes=16 << 20),
    )(xa, columns_mean.astype(jnp.float32), rows_t)

    return y_padded[:, :OUT]


def _reference(x, alpha, columns_mean, rows_mean):
    xy = columns_mean @ rows_mean.T
    r2 = jnp.sum(rows_mean ** 2, axis=1)[None, :]
    c2 = jnp.sum(columns_mean ** 2, axis=1)[:, None]
    w = jnp.exp(-(r2 + c2 - 2.0 * xy))
    return (x * alpha[None, :]) @ w


if __name__ == "__main__":
    # Module config (small, consistent with the module's Linear-style forward).
    in_features, out_features, dim = 32, 64, 2
    batch = 8
    prior_std = 1.0

    key = jax.random.PRNGKey(0)
    k_x, k_cm, k_rm, k_am = jax.random.split(key, 4)

    # Deterministic "normal_(std=prior_std)" initialization of parameters.
    columns_mean = prior_std * jax.random.normal(k_cm, (in_features, dim), jnp.float32)
    rows_mean = prior_std * jax.random.normal(k_rm, (out_features, dim), jnp.float32)
    alpha_mean = prior_std * jax.random.normal(k_am, (in_features,), jnp.float32)

    x = jax.random.normal(k_x, (batch, in_features), jnp.float32)

    y = kernel_dense_bayesian_forward(x, alpha_mean, columns_mean, rows_mean)
    y = jax.block_until_ready(y)

    y_ref = _reference(x, alpha_mean, columns_mean, rows_mean)
    assert y.shape == (batch, out_features)
    assert jnp.allclose(y, y_ref, rtol=1e-4, atol=1e-4), "mismatch vs reference"

    print("KERNEL_OK")
</pallas_src>

<mosaic_0001>
module attributes {stable_mosaic.version = 11 : i64} {
  func.func @_kernel_dense_bayesian_kernel(%arg0: memref<8x32xf32, #tpu.memory_space<vmem>>, %arg1: memref<32x2xf32, #tpu.memory_space<vmem>>, %arg2: memref<2x128xf32, #tpu.memory_space<vmem>>, %arg3: memref<8x128xf32, #tpu.memory_space<vmem>>) attributes {dimension_semantics = [], scalar_prefetch = 0 : i64, scratch_operands = 0 : i64, tpu.core_type = #tpu.core_type<tc>} {
    %c0 = arith.constant 0 : index
    %c0_0 = arith.constant 0 : index
    %0 = vector.load %arg1[%c0, %c0_0] : memref<32x2xf32, #tpu.memory_space<vmem>>, vector<32x2xf32>
    %c0_1 = arith.constant 0 : index
    %c0_2 = arith.constant 0 : index
    %1 = vector.load %arg2[%c0_1, %c0_2] : memref<2x128xf32, #tpu.memory_space<vmem>>, vector<2x128xf32>
    %2 = vector.extract_strided_slice %0 {offsets = [0, 0], sizes = [32, 1], strides = [1, 1]} : vector<32x2xf32> to vector<32x1xf32>
    %3 = vector.extract_strided_slice %0 {offsets = [0, 0], sizes = [32, 1], strides = [1, 1]} : vector<32x2xf32> to vector<32x1xf32>
    %4 = arith.mulf %2, %3 : vector<32x1xf32>
    %5 = vector.extract_strided_slice %1 {offsets = [0, 0], sizes = [1, 128], strides = [1, 1]} : vector<2x128xf32> to vector<1x128xf32>
    %6 = vector.extract_strided_slice %1 {offsets = [0, 0], sizes = [1, 128], strides = [1, 1]} : vector<2x128xf32> to vector<1x128xf32>
    %7 = arith.mulf %5, %6 : vector<1x128xf32>
    %8 = vector.extract_strided_slice %0 {offsets = [0, 0], sizes = [32, 1], strides = [1, 1]} : vector<32x2xf32> to vector<32x1xf32>
    %9 = vector.extract_strided_slice %1 {offsets = [0, 0], sizes = [1, 128], strides = [1, 1]} : vector<2x128xf32> to vector<1x128xf32>
    %10 = vector.broadcast %8 : vector<32x1xf32> to vector<32x128xf32>
    %11 = vector.broadcast %9 : vector<1x128xf32> to vector<32x128xf32>
    %12 = arith.mulf %10, %11 : vector<32x128xf32>
    %13 = vector.extract_strided_slice %0 {offsets = [0, 1], sizes = [32, 1], strides = [1, 1]} : vector<32x2xf32> to vector<32x1xf32>
    %14 = vector.extract_strided_slice %0 {offsets = [0, 1], sizes = [32, 1], strides = [1, 1]} : vector<32x2xf32> to vector<32x1xf32>
    %15 = arith.mulf %13, %14 : vector<32x1xf32>
    %16 = arith.addf %4, %15 : vector<32x1xf32>
    %17 = vector.extract_strided_slice %1 {offsets = [1, 0], sizes = [1, 128], strides = [1, 1]} : vector<2x128xf32> to vector<1x128xf32>
    %18 = vector.extract_strided_slice %1 {offsets = [1, 0], sizes = [1, 128], strides = [1, 1]} : vector<2x128xf32> to vector<1x128xf32>
    %19 = arith.mulf %17, %18 : vector<1x128xf32>
    %20 = arith.addf %7, %19 : vector<1x128xf32>
    %21 = vector.extract_strided_slice %0 {offsets = [0, 1], sizes = [32, 1], strides = [1, 1]} : vector<32x2xf32> to vector<32x1xf32>
    %22 = vector.extract_strided_slice %1 {offsets = [1, 0], sizes = [1, 128], strides = [1, 1]} : vector<2x128xf32> to vector<1x128xf32>
    %23 = vector.broadcast %21 : vector<32x1xf32> to vector<32x128xf32>
    %24 = vector.broadcast %22 : vector<1x128xf32> to vector<32x128xf32>
    %25 = arith.mulf %23, %24 : vector<32x128xf32>
    %26 = arith.addf %12, %25 : vector<32x128xf32>
    %27 = vector.broadcast %16 : vector<32x1xf32> to vector<32x128xf32>
    %28 = vector.broadcast %20 : vector<1x128xf32> to vector<32x128xf32>
    %29 = arith.addf %27, %28 : vector<32x128xf32>
    %cst = arith.constant 2.000000e+00 : f32
    %30 = vector.broadcast %cst : f32 to vector<32x128xf32>
    %31 = arith.mulf %30, %26 : vector<32x128xf32>
    %32 = arith.subf %29, %31 : vector<32x128xf32>
    %cst_3 = arith.constant 0.000000e+00 : f32
    %33 = vector.broadcast %cst_3 : f32 to vector<32x128xf32>
    %34 = arith.subf %33, %32 : vector<32x128xf32>
    %35 = math.exp %34 : vector<32x128xf32>
    %c0_4 = arith.constant 0 : index
    %c0_5 = arith.constant 0 : index
    %36 = vector.load %arg0[%c0_4, %c0_5] : memref<8x32xf32, #tpu.memory_space<vmem>>, vector<8x32xf32>
    %cst_6 = arith.constant dense<0.000000e+00> : vector<8x128xf32>
    %37 = tpu.matmul %36, %35, %cst_6 {dimension_numbers = #tpu.dot_dimension_numbers<[1], [0], [0], [1], [0, 0, 1, 1], [], []>} : vector<8x32xf32>, vector<32x128xf32>, vector<8x128xf32> -> vector<8x128xf32>
    %c0_7 = arith.constant 0 : index
    %c0_8 = arith.constant 0 : index
    %38 = vector.load %arg3[%c0_7, %c0_8] : memref<8x128xf32, #tpu.memory_space<vmem>>, vector<8x128xf32>
    tpu.vector_store %arg3[%c0_7, %c0_8], %37 {strides = array<i32>} : memref<8x128xf32, #tpu.memory_space<vmem>>, vector<8x128xf32>,
    return
  }
}

</mosaic_0001>

<llo_original>
// kernel: tpu_custom_call.1
$region0: #{tpu_custom_call.1}
  #allocation0 [shape = 'u32[]', space=smem, size = 0x4, offset = 0x4, fixed_abs, tag = 'smem constant byte address 0x4 - core index']
  #allocation1 [shape = 'u32[144,128]{1,0:T(1,128)}', space=vmem, size = 0x12000, scoped, tag = 'internal scratch']
  %s0 = inlined_call_operand.vmem [shape: f32[8,32], index: 0, kind: input, shape index: {}]
  %s1 = inlined_call_operand.vmem [shape: f32[32,2], index: 1, kind: input, shape index: {}]
  %s2 = inlined_call_operand.vmem [shape: f32[2,128], index: 2, kind: input, shape index: {}]
  %s3 = inlined_call_operand.hbm [shape: f32[8,128], index: 3, kind: output, shape index: {}]
  %s4 = sld [smem:[#allocation0]]
  $region22: #{tpu_custom_call.1} parent=0
    _
  %s6 = ssub.s32 1, %s4
  %s7 = scalar_select 0, %s6, %s4
  $region1: #{tpu_custom_call.1} parent=0
    #allocation2 [shape = 'u8[4096]{0}', space=vmem, size = 0x1000, scoped, tag = 'output window, operand 0, single buffered']
    #allocation3 [shape = 's32[1]{0}', space=sflag, size = 0x4, scoped, tag = 'scoped memory for tpu_custom_call.1']
    %8 = vsyncpa [#allocation3], 0
    // Predicated region
    $region2: #{tpu_custom_call.1} parent=1 // pred_check
      _
    $region3: #{tpu_custom_call.1} parent=1 // pred_check_branch
      %10 = sbr.rel (0) target = $region5
    $region4: #{tpu_custom_call.1} parent=1 // pred_region
      _
    $region5: #{tpu_custom_call.1} parent=1 // pred_fallthru
      _
    // Predicated region
    $region6: #{tpu_custom_call.1} parent=1 // pred_check
      _
    $region7: #{tpu_custom_call.1} parent=1 // pred_check_branch
      %12 = sbr.rel (0) target = $region9
    $region8: #{tpu_custom_call.1} parent=1 // pred_region
      _
    $region9: #{tpu_custom_call.1} parent=1 // pred_fallthru
      _
    // Predicated region
    $region10: #{tpu_custom_call.1} parent=1 // pred_check
      _
    $region11: #{tpu_custom_call.1} parent=1 // pred_check_branch
      %14 = sbr.rel (0) target = $region13
    $region12: #{tpu_custom_call.1} parent=1 // pred_region
      _
    $region13: #{tpu_custom_call.1} parent=1 // pred_fallthru
      _
    %v15 = vld [vmem:[%s1] sm:$0xff]
    %v16 = vld [vmem:[%s1 + $0x8] sm:$0xff]
    %v17 = vld [vmem:[%s1 + $0x10] sm:$0xff]
    %v18 = vld [vmem:[%s1 + $0x18] sm:$0xff]
    %v19 = vld [vmem:[%s2] sm:$0x3]
    %v20 = vmul.f32 %v15, %v15
    %v21 = vmul.f32 %v16, %v16
    %v22 = vmul.f32 %v17, %v17
    %v23 = vmul.f32 %v18, %v18
    %v24 = vmul.f32 %v19, %v19
    %26 = vset.pattern.permute.xlu0 0
    %27 = vperm.xlu0 %26, %v15
    %v28 = vpop.permute.xlu0 %27
    %31 = vset.pattern.permute.xlu0 0
    %32 = vperm.xlu0 %31, %v16
    %v33 = vpop.permute.xlu0 %32
    %36 = vset.pattern.permute.xlu0 0
    %37 = vperm.xlu0 %36, %v17
    %v38 = vpop.permute.xlu0 %37
    %41 = vset.pattern.permute.xlu0 0
    %42 = vperm.xlu0 %41, %v18
    %v43 = vpop.permute.xlu0 %42
    %v45 = vlaneseq
    %v46 = vshrl.u32 %v45, 7
    %v47 = vsub.s32 0, %v46
    %v48 = vrot.slane %v19, %v47
    %v49 = vmul.f32 %v28, %v48
    %v50 = vmul.f32 %v33, %v48
    %v51 = vmul.f32 %v38, %v48
    %v52 = vmul.f32 %v43, %v48
    %57 = vrot.lane.b32.xlu0 %v20, 127
    %v58 = vpop.permute.xlu0 %57
    %59 = vrot.lane.b32.xlu0 %v21, 127
    %v60 = vpop.permute.xlu0 %59
    %61 = vrot.lane.b32.xlu0 %v22, 127
    %v62 = vpop.permute.xlu0 %61
    %63 = vrot.lane.b32.xlu0 %v23, 127
    %v64 = vpop.permute.xlu0 %63
    %v69 = vadd.f32 %v20, %v58
    %v70 = vadd.f32 %v21, %v60
    %v71 = vadd.f32 %v22, %v62
    %v72 = vadd.f32 %v23, %v64
    %v74 = vrot.slane %v24, 1
    %v76 = vadd.f32 %v24, %v74
    %77 = vset.pattern.permute.xlu0 1
    %78 = vperm.xlu0 %77, %v15
    %v79 = vpop.permute.xlu0 %78
    %81 = vset.pattern.permute.xlu0 1
    %82 = vperm.xlu0 %81, %v16
    %v83 = vpop.permute.xlu0 %82
    %85 = vset.pattern.permute.xlu0 1
    %86 = vperm.xlu0 %85, %v17
    %v87 = vpop.permute.xlu0 %86
    %89 = vset.pattern.permute.xlu0 1
    %90 = vperm.xlu0 %89, %v18
    %v91 = vpop.permute.xlu0 %90
    %v93 = vlaneseq
    %v94 = vshrl.u32 %v93, 7
    %v95 = vsub.s32 1, %v94
    %v96 = vrot.slane %v19, %v95
    %v97 = vmul.f32 %v79, %v96
    %v98 = vmul.f32 %v83, %v96
    %v99 = vmul.f32 %v87, %v96
    %v100 = vmul.f32 %v91, %v96
    %v101 = vadd.f32 %v49, %v97
    %v102 = vadd.f32 %v50, %v98
    %v103 = vadd.f32 %v51, %v99
    %v104 = vadd.f32 %v52, %v100
    %106 = vset.pattern.permute.xlu0 0
    %107 = vperm.xlu0 %106, %v69
    %v108 = vpop.permute.xlu0 %107
    %111 = vset.pattern.permute.xlu0 0
    %112 = vperm.xlu0 %111, %v70
    %v113 = vpop.permute.xlu0 %112
    %116 = vset.pattern.permute.xlu0 0
    %117 = vperm.xlu0 %116, %v71
    %v118 = vpop.permute.xlu0 %117
    %121 = vset.pattern.permute.xlu0 0
    %122 = vperm.xlu0 %121, %v72
    %v123 = vpop.permute.xlu0 %122
    %v125 = vlaneseq
    %v126 = vshrl.u32 %v125, 7
    %v127 = vsub.s32 0, %v126
    %v128 = vrot.slane %v76, %v127
    %v129 = vadd.f32 %v108, %v128
    %v130 = vadd.f32 %v113, %v128
    %v131 = vadd.f32 %v118, %v128
    %v132 = vadd.f32 %v123, %v128
    %v133 = vmul.f32 %v101, 2.0
    %v134 = vmul.f32 %v102, 2.0
    %v135 = vmul.f32 %v103, 2.0
    %v136 = vmul.f32 %v104, 2.0
    %v137 = vsub.f32 %v129, %v133
    %v138 = vsub.f32 %v130, %v134
    %v139 = vsub.f32 %v131, %v135
    %v140 = vsub.f32 %v132, %v136
    %v141 = vsub.f32 0.0, %v137
    %v142 = vsub.f32 0.0, %v138
    %v143 = vsub.f32 0.0, %v139
    %v144 = vsub.f32 0.0, %v140
    %v145 = vmul.f32 %v141, 1.442695
    %v146 = vpow.pop %v145
    %v147 = vmul.f32 %v142, 1.442695
    %v148 = vpow.pop %v147
    %v149 = vmul.f32 %v143, 1.442695
    %v150 = vpow.pop %v149
    %v151 = vmul.f32 %v144, 1.442695
    %v152 = vpow.pop %v151
    %v153 = vld [vmem:[%s0] sm:$0xff]
    %vm154 = vcmask 261120
    %v156 = vsel %vm154, %v153, 0
    %158 = vmatprep.subr.mxu0 0.0
    %159 = vmatpush1.msra.mxu0 %v146
    %160 = vmatprep.subr.mxu0 0.0
    %161 = vmatpush1.msra.mxu0 %v148
    %162 = vmatprep.subr.mxu0 0.0
    %163 = vmatpush1.msra.mxu0 %v150
    %164 = vmatprep.subr.mxu0 0.0
    %165 = vmatpush1.msra.mxu0 %v152
    %166 = vmatprep.subr.mxu0 0.0
    %167 = vmatpush1.msra.mxu0 0.0
    %168 = vmatprep.subr.mxu0 0.0
    %169 = vmatpush1.msra.mxu0 0.0
    %170 = vmatprep.subr.mxu0 0.0
    %171 = vmatpush1.msra.mxu0 0.0
    %172 = vmatprep.subr.mxu0 0.0
    %173 = vmatpush1.msra.mxu0 0.0
    %174 = vmatprep.subr.mxu0 0.0
    %175 = vmatpush1.msra.mxu0 0.0
    %176 = vmatprep.subr.mxu0 0.0
    %177 = vmatpush1.msra.mxu0 0.0
    %178 = vmatprep.subr.mxu0 0.0
    %179 = vmatpush1.msra.mxu0 0.0
    %180 = vmatprep.subr.mxu0 0.0
    %181 = vmatpush1.msra.mxu0 0.0
    %182 = vmatprep.subr.mxu0 0.0
    %183 = vmatpush1.msra.mxu0 0.0
    %184 = vmatprep.subr.mxu0 0.0
    %185 = vmatpush1.msra.mxu0 0.0
    %186 = vmatprep.subr.mxu0 0.0
    %187 = vmatpush1.msra.mxu0 0.0
    %188 = vmatprep.subr.mxu0 0.0
    %189 = vmatpush1.msra.mxu0 0.0
    %190 = vmatprep.subr.mxu0 0.0
    %191 = vmatpush1.msra.mxu0 0.0
    %192 = vmatprep.subr.mxu0 0.0
    %193 = vmatpush1.msra.mxu0 0.0
    %194 = vmatprep.subr.mxu0 0.0
    %195 = vmatpush1.msra.mxu0 0.0
    %196 = vmatprep.subr.mxu0 0.0
    %197 = vmatpush1.msra.mxu0 0.0
    %198 = vmatprep.subr.mxu0 0.0
    %199 = vmatpush1.msra.mxu0 0.0
    %200 = vmatprep.subr.mxu0 0.0
    %201 = vmatpush1.msra.mxu0 0.0
    %202 = vmatprep.subr.mxu0 0.0
    %203 = vmatpush1.msra.mxu0 0.0
    %204 = vmatprep.subr.mxu0 0.0
    %205 = vmatpush1.msra.mxu0 0.0
    %206 = vmatprep.subr.mxu0 0.0
    %207 = vmatpush1.msra.mxu0 0.0
    %208 = vmatprep.subr.mxu0 0.0
    %209 = vmatpush1.msra.mxu0 0.0
    %210 = vmatprep.subr.mxu0 0.0
    %211 = vmatpush1.msra.mxu0 0.0
    %212 = vmatprep.subr.mxu0 0.0
    %213 = vmatpush1.msra.mxu0 0.0
    %214 = vmatprep.subr.mxu0 0.0
    %215 = vmatpush1.msra.mxu0 0.0
    %216 = vmatprep.subr.mxu0 0.0
    %217 = vmatpush1.msra.mxu0 0.0
    %218 = vmatprep.subr.mxu0 0.0
    %219 = vmatpush1.msra.mxu0 0.0
    %220 = vmatprep.subr.mxu0 0.0
    %221 = vmatpush1.msra.mxu0 0.0
    %222 = vmatprep.mubr.f32.mxu0 0.0
    %223 = vmatmul.mubr.f32.gmra.mrb[0].mxu0 %v156
    %v224 = vpop.f32.mrb[0].mxu0
    %v225 = vadd.f32 0.0, %v224
    %v226 = vpop.f32.mrb[0].mxu0
    %227 = vdwg.mxu0
    %228 = vst [vmem:[#allocation2] sm:$0xff] %v225
    // Predicated region
    $region14: #{tpu_custom_call.1} parent=1 // pred_check
      _
    $region15: #{tpu_custom_call.1} parent=1 // pred_check_branch
      %230 = sbr.rel (0) target = $region17
    $region16: #{tpu_custom_call.1} parent=1 // pred_region
      %s232 = ssub.s32 128, 128
      %233 = vsyncadd [#allocation3], %s232
      %s235 = sshll.u32 [#allocation2], 4
      %s236 = int_to_ptr.vmem [resolvable:$true] %s235
      %238 = dma.vmem_to_hbm [thread:$0]  %s236, 128, %s3, [#allocation3]
    $region17: #{tpu_custom_call.1} parent=1 // pred_fallthru
      _
    // Predicated region
    $region18: #{tpu_custom_call.1} parent=1 // pred_check
      _
    $region19: #{tpu_custom_call.1} parent=1 // pred_check_branch
      %240 = sbr.rel (0) target = $region21
    $region20: #{tpu_custom_call.1} parent=1 // pred_region
      %241 = dma.done [#allocation3], 128
    $region21: #{tpu_custom_call.1} parent=1 // pred_fallthru
      _
    %242 = vsyncpa [#allocation3], 1

</llo_original>
